<compile_context>
chip_gen: v7x
topology: tpu7x:2x2x1
jax: 0.10.0
libtpu: 0.0.40
codegen_flags: <defaults>
</compile_context>

<pallas_src>
import functools

import jax
import jax.numpy as jnp
from jax.experimental import pallas as pl
from jax.experimental.pallas import tpu as pltpu


def _round_up(x, m):
    return ((x + m - 1) // m) * m


def _ctlstm_kernel(beta, H, xin_ref, cprev_ref, w_ref, b_ref, out_ref):
    # xin_ref   : (TB, 3H) bf16 = [type | hidden_t_i_minus | duration]
    # cprev_ref : (TB, 2H) bf16 = [cell_t_i_minus | cell_bar_im1]
    # w_ref     : (3H, 8H) bf16 fused weights, column blocks:
    #             [fgt | fgt_bar | in | in_bar | out(+du3) | dur | pre_c | decay]
    # b_ref     : (1, 8H) f32 fused bias
    # out_ref   : (TB, 4H) = [cell_i | cell_bar_i | gate_decay | gate_output]

    # Single MXU matmul (bf16 operands, f32 accumulate) for every gate
    # pre-activation, plus the f32 bias.
    pre = (jnp.dot(xin_ref[...], w_ref[...],
                   preferred_element_type=jnp.float32)
           + b_ref[...])                                       # (TB, 8H) f32

    # Sigmoids over the six sigmoid gates, split at a full-vreg boundary:
    # lanes 0:4H (=128) and 4H:6H (=64).  exp(-x) + approx reciprocal keeps
    # the divide on the EUP slot instead of the VPU-serialized path.
    sg04 = pl.reciprocal(1.0 + jnp.exp(-pre[:, :4 * H]), approx=True)
    sg46 = pl.reciprocal(1.0 + jnp.exp(-pre[:, 4 * H:6 * H]), approx=True)
    gate_output = sg46[:, :H]          # sigmoid(out-gate pre + du3(dur))
    gate_duration = sg46[:, H:2 * H]   # sigmoid(du1(dur) + du2(type))

    g_pre_c = pre[:, 6 * H:7 * H]      # raw pre_c (no tanh), matching PyTorch
    g_decay = pre[:, 7 * H:8 * H]

    # F.softplus(x, beta) with PyTorch's numerical threshold (beta*x > 20 -> x).
    bx = beta * g_decay
    gate_decay = jnp.where(
        bx > 20.0,
        g_decay,
        (1.0 / beta) * jnp.log1p(jnp.exp(jnp.minimum(bx, 20.0))),
    )

    # Recurrence as one full-128-lane multiply:
    #   sg04                    = [fgt | fgt_bar | in | in_bar]
    #   [cprev | common|common] = [cell | cell_bar | common | common]
    common = g_pre_c * gate_duration                            # (TB, H)
    cprev = cprev_ref[...].astype(jnp.float32)                  # (TB, 2H)
    prod = sg04 * jnp.concatenate([cprev, common, common], axis=-1)
    cells = prod[:, :2 * H] + prod[:, 2 * H:4 * H]   # [cell_i | cell_bar_i]

    # One unmasked 128-lane store for the whole packed output.
    out_ref[...] = jnp.concatenate(
        [cells, gate_decay, gate_output], axis=-1).astype(out_ref.dtype)


def pack_params(w1a, w1b, b1, wdu1, wdu2, bdu2, wdu3, *, dtype=jnp.bfloat16):
    """Fuse the five linear layers into one (3H, 8H) weight and (1, 8H) bias.

    Inputs are already transposed ((in_dim, out_dim)): w1a/w1b are the columns
    of linear1 acting on the type / hidden halves, wdu* are linear_du*.
    Column-block order: [fgt | fgt_bar | in | in_bar | out(+du3) | dur | pre_c | decay].
    Weights are stored bf16 (MXU-native); the small bias stays f32.
    """
    H = wdu1.shape[0]
    zeros = jnp.zeros((H, H), w1a.dtype)

    def blk(w, k):
        return w[:, k * H:(k + 1) * H]

    # Original linear1 chunk order: in(0), fgt(1), out(2), pre_c(3),
    #                               in_bar(4), fgt_bar(5), decay(6).
    cols_t = [blk(w1a, 1), blk(w1a, 5), blk(w1a, 0), blk(w1a, 4),
              blk(w1a, 2), wdu2, blk(w1a, 3), blk(w1a, 6)]
    cols_h = [blk(w1b, 1), blk(w1b, 5), blk(w1b, 0), blk(w1b, 4),
              blk(w1b, 2), zeros, blk(w1b, 3), blk(w1b, 6)]
    cols_d = [zeros, zeros, zeros, zeros,
              wdu3, wdu1, zeros, zeros]

    w_fused = jnp.concatenate([
        jnp.concatenate(cols_t, axis=1),
        jnp.concatenate(cols_h, axis=1),
        jnp.concatenate(cols_d, axis=1)], axis=0).astype(dtype)   # (3H, 8H)

    def bblk(k):
        return b1[:, k * H:(k + 1) * H]

    b_fused = jnp.concatenate(
        [bblk(1), bblk(5), bblk(0), bblk(4),
         bblk(2), bdu2, bblk(3), bblk(6)], axis=1).astype(jnp.float32)  # (1,8H)
    return w_fused, b_fused


def _batch_tiling(B, *, sublane=16, tb_cap=1024):
    """Pick (nb, TB): no padding cliff, nb>=2 for v7x when B is big enough."""
    nb = max(1, pl.cdiv(B, tb_cap))
    if B >= 2 * sublane:
        nb = max(nb, 2)          # shard the batch across both v7x TensorCores
    TB = _round_up(pl.cdiv(B, nb), sublane)
    return nb, TB


def ctlstm_forward_packed(xin, cprev, fused_params, beta=1.0,
                          out_dtype=jnp.bfloat16):
    """Packed-slab API (canonical inter-timestep layout, no HBM round trips).

    xin   : (B, 3H) = [type_input | hidden_t_i_minus | duration_input]
    cprev : (B, 2H) = [cell_t_i_minus | cell_bar_im1]
    returns (B, 4H) = [cell_i | cell_bar_i | gate_decay | gate_output]
    """
    B = xin.shape[0]
    H = cprev.shape[-1] // 2
    w_fused, b_fused = fused_params
    act_dtype = w_fused.dtype
    xin = xin.astype(act_dtype)
    cprev = cprev.astype(act_dtype)

    nb, TB = _batch_tiling(B)
    B_pad = nb * TB
    if B_pad != B:
        xin = jnp.pad(xin, ((0, B_pad - B), (0, 0)))
        cprev = jnp.pad(cprev, ((0, B_pad - B), (0, 0)))

    in_bytes = jnp.dtype(act_dtype).itemsize
    out_bytes = jnp.dtype(jnp.dtype(out_dtype)).itemsize
    cost = pl.CostEstimate(
        flops=2 * B_pad * (3 * H) * (8 * H) + 16 * B_pad * H,
        transcendentals=14 * B_pad * H,      # exp + recip for sigmoids, softplus
        bytes_accessed=(in_bytes * (B_pad * 5 * H + 3 * H * 8 * H)
                        + 4 * 8 * H
                        + out_bytes * B_pad * 4 * H))

    kernel = functools.partial(_ctlstm_kernel, float(beta), H)

    out = pl.pallas_call(
        kernel,
        grid=(nb,),
        in_specs=[
            pl.BlockSpec((TB, 3 * H), lambda i: (i, 0)),
            pl.BlockSpec((TB, 2 * H), lambda i: (i, 0)),
            pl.BlockSpec((3 * H, 8 * H), lambda i: (0, 0)),   # weights resident
            pl.BlockSpec((1, 8 * H), lambda i: (0, 0)),
        ],
        out_specs=pl.BlockSpec((TB, 4 * H), lambda i: (i, 0)),
        out_shape=jax.ShapeDtypeStruct((B_pad, 4 * H), out_dtype),
        compiler_params=pltpu.CompilerParams(
            dimension_semantics=("parallel",)),
        cost_estimate=cost,
    )(xin, cprev, w_fused, b_fused)

    return out[:B]


def ctlstm_forward(type_input, duration_input, hidden_t_i_minus,
                   cell_t_i_minus, cell_bar_im1, fused_params, beta=1.0,
                   out_dtype=jnp.bfloat16):
    """Spec-compatible CTLSTMCell.forward wrapper around the packed kernel.

    Prefer ctlstm_forward_packed when driving a time loop: keeping the
    (B,3H)/(B,2H)/(B,4H) slabs as the canonical layout avoids the concat /
    split HBM round trips this compatibility wrapper performs.
    """
    # TODO(synk): for per-timestep scans, move the time loop into the kernel
    # (grid=(nb, T), weights resident, cell/cell_bar carried in VMEM scratch).
    H = type_input.shape[-1]
    xin = jnp.concatenate([type_input, hidden_t_i_minus, duration_input],
                          axis=-1)
    cprev = jnp.concatenate([cell_t_i_minus, cell_bar_im1], axis=-1)
    out = ctlstm_forward_packed(xin, cprev, fused_params, beta, out_dtype)
    return (out[:, 0:H], out[:, H:2 * H],
            out[:, 2 * H:3 * H], out[:, 3 * H:4 * H])


def _reference_forward(type_input, duration_input, hidden, cell, cell_bar,
                       params, beta=1.0):
    """Pure-JAX f32 reference mirroring the PyTorch module (unfused params)."""
    w1a, w1b, b1, wdu1, wdu2, bdu2, wdu3 = params
    H = type_input.shape[-1]
    out7 = type_input @ w1a + hidden @ w1b + b1
    chunks = [out7[:, i * H:(i + 1) * H] for i in range(7)]
    g_in, g_forget, g_out, g_pre_c, g_in_bar, g_fgt_bar, g_decay = chunks
    pd1 = duration_input @ wdu1
    pd2 = type_input @ wdu2 + bdu2
    du3 = duration_input @ wdu3
    sig = jax.nn.sigmoid
    gate_input = sig(g_in)
    gate_forget = sig(g_forget)
    gate_output = sig(g_out + du3)
    gate_duration = sig(pd1 + pd2)
    gate_input_bar = sig(g_in_bar)
    gate_forget_bar = sig(g_fgt_bar)
    gate_decay = jax.nn.softplus(beta * g_decay) / beta
    common = g_pre_c * gate_duration
    cell_i = gate_forget * cell + gate_input * common
    cell_bar_i = gate_forget_bar * cell_bar + gate_input_bar * common
    return cell_i, cell_bar_i, gate_decay, gate_output


if __name__ == "__main__":
    B, H = 8, 32
    beta = 1.0
    key = jax.random.PRNGKey(0)
    ks = jax.random.split(key, 12)

    # Inputs (B, H)
    type_input = jax.random.normal(ks[0], (B, H), jnp.float32)
    duration_input = jax.random.normal(ks[1], (B, H), jnp.float32)
    hidden = jax.random.normal(ks[2], (B, H), jnp.float32)
    cell = jax.random.normal(ks[3], (B, H), jnp.float32)
    cell_bar = jax.random.normal(ks[4], (B, H), jnp.float32)

    # Parameters (shapes follow the PyTorch module; weights stored transposed
    # as (in_dim, out_dim)).
    scale = 1.0 / jnp.sqrt(jnp.float32(2 * H))
    w1a = jax.random.normal(ks[5], (H, 7 * H), jnp.float32) * scale   # linear1 cols for type
    w1b = jax.random.normal(ks[6], (H, 7 * H), jnp.float32) * scale   # linear1 cols for hidden
    b1 = jax.random.normal(ks[7], (1, 7 * H), jnp.float32) * scale
    scale_h = 1.0 / jnp.sqrt(jnp.float32(H))
    wdu1 = jax.random.normal(ks[8], (H, H), jnp.float32) * scale_h    # linear_du1 (no bias)
    wdu2 = jax.random.normal(ks[9], (H, H), jnp.float32) * scale_h    # linear_du2
    bdu2 = jax.random.normal(ks[10], (1, H), jnp.float32) * scale_h   # linear_du2 bias
    wdu3 = jax.random.normal(ks[11], (H, H), jnp.float32) * scale_h   # linear_du3 (no bias)

    params = (w1a, w1b, b1, wdu1, wdu2, bdu2, wdu3)
    fused_params = pack_params(*params)            # bf16 weights, f32 bias

    outs = ctlstm_forward(type_input, duration_input, hidden, cell, cell_bar,
                          fused_params, beta=beta)
    outs = jax.block_until_ready(outs)

    # Compare against an f32 reference evaluated on the same bf16-rounded
    # activations / weights the kernel sees (f32 bias, f32 math).
    rt = lambda x: x.astype(jnp.bfloat16).astype(jnp.float32)
    params_rt = (rt(w1a), rt(w1b), b1, rt(wdu1), rt(wdu2), bdu2, rt(wdu3))
    refs = _reference_forward(rt(type_input), rt(duration_input), rt(hidden),
                              rt(cell), rt(cell_bar), params_rt, beta=beta)
    for o, r in zip(outs, refs):
        assert o.shape == (B, H)
        assert jnp.allclose(o.astype(jnp.float32), r, atol=5e-2, rtol=5e-2), (
            float(jnp.max(jnp.abs(o.astype(jnp.float32) - r))))

    # TODO(synk): the `decay` method (exp-decay interpolation + tanh readout)
    # is a separate elementwise op in the PyTorch module, not part of forward();
    # it is not implemented here.
    print("KERNEL_OK")
</pallas_src>

<mosaic_0001>
module attributes {stable_mosaic.version = 11 : i64} {
  func.func @_ctlstm_kernel(%arg0: i32, %arg1: memref<16x96xbf16, #tpu.memory_space<vmem>>, %arg2: memref<16x64xbf16, #tpu.memory_space<vmem>>, %arg3: memref<96x256xbf16, #tpu.memory_space<vmem>>, %arg4: memref<1x256xf32, #tpu.memory_space<vmem>>, %arg5: memref<16x128xbf16, #tpu.memory_space<vmem>>) attributes {dimension_semantics = [#tpu.dimension_semantics<parallel>], iteration_bounds = array<i64: 1>, scalar_prefetch = 0 : i64, scratch_operands = 0 : i64, tpu.core_type = #tpu.core_type<tc>, window_params = [{transform_indices = @transform_0, window_bounds = array<i64: 16, 96>}, {transform_indices = @transform_1, window_bounds = array<i64: 16, 64>}, {pipeline_mode = #tpu.pipeline_mode<synchronous>, transform_indices = @transform_2, window_bounds = array<i64: 96, 256>}, {pipeline_mode = #tpu.pipeline_mode<synchronous>, transform_indices = @transform_3, window_bounds = array<i64: 1, 256>}, {transform_indices = @transform_4, window_bounds = array<i64: 16, 128>}]} {
    %c0 = arith.constant 0 : index
    %c0_0 = arith.constant 0 : index
    %0 = vector.load %arg1[%c0, %c0_0] : memref<16x96xbf16, #tpu.memory_space<vmem>>, vector<16x96xbf16>
    %c0_1 = arith.constant 0 : index
    %c0_2 = arith.constant 0 : index
    %1 = vector.load %arg3[%c0_1, %c0_2] : memref<96x256xbf16, #tpu.memory_space<vmem>>, vector<96x256xbf16>
    %cst = arith.constant dense<0.000000e+00> : vector<16x256xf32>
    %2 = tpu.matmul %0, %1, %cst {dimension_numbers = #tpu.dot_dimension_numbers<[1], [0], [0], [1], [0, 0, 1, 1], [], []>} : vector<16x96xbf16>, vector<96x256xbf16>, vector<16x256xf32> -> vector<16x256xf32>
    %c0_3 = arith.constant 0 : index
    %c0_4 = arith.constant 0 : index
    %3 = vector.load %arg4[%c0_3, %c0_4] : memref<1x256xf32, #tpu.memory_space<vmem>>, vector<1x256xf32>
    %4 = vector.broadcast %3 : vector<1x256xf32> to vector<16x256xf32>
    %5 = arith.addf %2, %4 : vector<16x256xf32>
    %6 = vector.extract_strided_slice %5 {offsets = [0, 0], sizes = [16, 128], strides = [1, 1]} : vector<16x256xf32> to vector<16x128xf32>
    %cst_5 = arith.constant 0.000000e+00 : f32
    %7 = vector.broadcast %cst_5 : f32 to vector<16x128xf32>
    %8 = arith.subf %7, %6 : vector<16x128xf32>
    %9 = math.exp %8 : vector<16x128xf32>
    %cst_6 = arith.constant 1.000000e+00 : f32
    %10 = vector.broadcast %cst_6 : f32 to vector<16x128xf32>
    %11 = arith.addf %10, %9 : vector<16x128xf32>
    %12 = tpu.reciprocal %11 {approx = true} : vector<16x128xf32> -> vector<16x128xf32>
    %13 = vector.extract_strided_slice %5 {offsets = [0, 128], sizes = [16, 64], strides = [1, 1]} : vector<16x256xf32> to vector<16x64xf32>
    %cst_7 = arith.constant 0.000000e+00 : f32
    %14 = vector.broadcast %cst_7 : f32 to vector<16x64xf32>
    %15 = arith.subf %14, %13 : vector<16x64xf32>
    %16 = math.exp %15 : vector<16x64xf32>
    %cst_8 = arith.constant 1.000000e+00 : f32
    %17 = vector.broadcast %cst_8 : f32 to vector<16x64xf32>
    %18 = arith.addf %17, %16 : vector<16x64xf32>
    %19 = tpu.reciprocal %18 {approx = true} : vector<16x64xf32> -> vector<16x64xf32>
    %20 = vector.extract_strided_slice %19 {offsets = [0, 0], sizes = [16, 32], strides = [1, 1]} : vector<16x64xf32> to vector<16x32xf32>
    %21 = vector.extract_strided_slice %19 {offsets = [0, 32], sizes = [16, 32], strides = [1, 1]} : vector<16x64xf32> to vector<16x32xf32>
    %22 = vector.extract_strided_slice %5 {offsets = [0, 192], sizes = [16, 32], strides = [1, 1]} : vector<16x256xf32> to vector<16x32xf32>
    %23 = vector.extract_strided_slice %5 {offsets = [0, 224], sizes = [16, 32], strides = [1, 1]} : vector<16x256xf32> to vector<16x32xf32>
    %cst_9 = arith.constant 1.000000e+00 : f32
    %24 = vector.broadcast %cst_9 : f32 to vector<16x32xf32>
    %25 = arith.mulf %24, %23 : vector<16x32xf32>
    %cst_10 = arith.constant 2.000000e+01 : f32
    %26 = vector.broadcast %cst_10 : f32 to vector<16x32xf32>
    %27 = arith.cmpf ogt, %25, %26 : vector<16x32xf32>
    %cst_11 = arith.constant 2.000000e+01 : f32
    %28 = vector.broadcast %cst_11 : f32 to vector<16x32xf32>
    %29 = arith.minimumf %25, %28 : vector<16x32xf32>
    %30 = math.exp %29 : vector<16x32xf32>
    %31 = math.log1p %30 : vector<16x32xf32>
    %cst_12 = arith.constant 1.000000e+00 : f32
    %32 = vector.broadcast %cst_12 : f32 to vector<16x32xf32>
    %33 = arith.mulf %32, %31 : vector<16x32xf32>
    %34 = arith.select %27, %23, %33 : vector<16x32xi1>, vector<16x32xf32>
    %35 = arith.mulf %22, %21 : vector<16x32xf32>
    %c0_13 = arith.constant 0 : index
    %c0_14 = arith.constant 0 : index
    %36 = vector.load %arg2[%c0_13, %c0_14] : memref<16x64xbf16, #tpu.memory_space<vmem>>, vector<16x64xbf16>
    %37 = arith.extf %36 : vector<16x64xbf16> to vector<16x64xf32>
    %38 = tpu.concatenate %37, %35, %35 in 1 : vector<16x64xf32>, vector<16x32xf32>, vector<16x32xf32> -> vector<16x128xf32>
    %39 = arith.mulf %12, %38 : vector<16x128xf32>
    %40 = vector.extract_strided_slice %39 {offsets = [0, 0], sizes = [16, 64], strides = [1, 1]} : vector<16x128xf32> to vector<16x64xf32>
    %41 = vector.extract_strided_slice %39 {offsets = [0, 64], sizes = [16, 64], strides = [1, 1]} : vector<16x128xf32> to vector<16x64xf32>
    %42 = arith.addf %40, %41 : vector<16x64xf32>
    %43 = tpu.concatenate %42, %34, %20 in 1 : vector<16x64xf32>, vector<16x32xf32>, vector<16x32xf32> -> vector<16x128xf32>
    %44 = arith.truncf %43 : vector<16x128xf32> to vector<16x128xbf16>
    %c0_15 = arith.constant 0 : index
    %c0_16 = arith.constant 0 : index
    %45 = vector.load %arg5[%c0_15, %c0_16] : memref<16x128xbf16, #tpu.memory_space<vmem>>, vector<16x128xbf16>
    tpu.vector_store %arg5[%c0_15, %c0_16], %44 {strides = array<i32>} : memref<16x128xbf16, #tpu.memory_space<vmem>>, vector<16x128xbf16>,
    return
  }
  func.func @transform_0(%arg0: i32) -> (i32, i32) {
    %c0_i32 = arith.constant 0 : i32
    %c0_i32_0 = arith.constant 0 : i32
    return %arg0, %c0_i32 : i32, i32
  }
  func.func @transform_1(%arg0: i32) -> (i32, i32) {
    %c0_i32 = arith.constant 0 : i32
    %c0_i32_0 = arith.constant 0 : i32
    return %arg0, %c0_i32 : i32, i32
  }
  func.func @transform_2(%arg0: i32) -> (i32, i32) {
    %c0_i32 = arith.constant 0 : i32
    %c0_i32_0 = arith.constant 0 : i32
    %c0_i32_1 = arith.constant 0 : i32
    return %c0_i32, %c0_i32_0 : i32, i32
  }
  func.func @transform_3(%arg0: i32) -> (i32, i32) {
    %c0_i32 = arith.constant 0 : i32
    %c0_i32_0 = arith.constant 0 : i32
    %c0_i32_1 = arith.constant 0 : i32
    return %c0_i32, %c0_i32_0 : i32, i32
  }
  func.func @transform_4(%arg0: i32) -> (i32, i32) {
    %c0_i32 = arith.constant 0 : i32
    %c0_i32_0 = arith.constant 0 : i32
    return %arg0, %c0_i32 : i32, i32
  }
}

</mosaic_0001>

<llo_original>
// kernel: tpu_custom_call.1
$region0: #{tpu_custom_call.1}
  #allocation0 [shape = 'u32[]', space=smem, size = 0x4, offset = 0x4, fixed_abs, tag = 'smem constant byte address 0x4 - core index']
  #allocation1 [shape = 'u32[144,128]{1,0:T(1,128)}', space=vmem, size = 0x12000, scoped, tag = 'internal scratch']
  %s0 = inlined_call_operand.hbm [shape: bf16[16,96], index: 0, kind: input, shape index: {}]
  %s1 = inlined_call_operand.hbm [shape: bf16[16,64], index: 1, kind: input, shape index: {}]
  %s2 = inlined_call_operand.hbm [shape: bf16[96,256], index: 2, kind: input, shape index: {}]
  %s3 = inlined_call_operand.vmem [shape: f32[1,256], index: 3, kind: input, shape index: {}]
  %s4 = inlined_call_operand.hbm [shape: bf16[16,128], index: 4, kind: output, shape index: {}]
  %s5 = sld [smem:[#allocation0]]
  $region38: #{tpu_custom_call.1} parent=0
    _
  %s7 = ssub.s32 1, %s5
  %s8 = scalar_select 0, %s7, %s5
  $region1: #{tpu_custom_call.1} parent=0
    #allocation2 [shape = 'u8[4096]{0}', space=vmem, size = 0x1000, scoped, tag = 'input window, operand 0, single buffered']
    #allocation3 [shape = 's32[1]{0}', space=sflag, size = 0x4, scoped, tag = 'scoped memory for tpu_custom_call.1']
    #allocation4 [shape = 's32[1]{0}', space=sflag, size = 0x4, scoped, tag = 'scoped memory for tpu_custom_call.1']
    #allocation5 [shape = 'u8[4096]{0}', space=vmem, size = 0x1000, scoped, tag = 'input window, operand 1, single buffered']
    #allocation6 [shape = 's32[1]{0}', space=sflag, size = 0x4, scoped, tag = 'scoped memory for tpu_custom_call.1']
    #allocation7 [shape = 'u8[49152]{0}', space=vmem, size = 0xc000, scoped, tag = 'input window, operand 2, single buffered']
    #allocation8 [shape = 'u8[4096]{0}', space=vmem, size = 0x1000, scoped, tag = 'output window, operand 0, single buffered']
    %9 = vsyncpa [#allocation3], 0
    %10 = vsyncpa [#allocation6], 0
    %11 = vsyncpa [#allocation4], 0
    // Predicated region
    $region2: #{tpu_custom_call.1} parent=1 // pred_check
      _
    $region3: #{tpu_custom_call.1} parent=1 // pred_check_branch
      %13 = sbr.rel (0) target = $region5
    $region4: #{tpu_custom_call.1} parent=1 // pred_region
      %s15 = ssub.s32 128, 128
      %16 = vsyncadd [#allocation3], %s15
      %s17 = sshll.u32 [#allocation2], 4
      %s18 = int_to_ptr.vmem [resolvable:$true] %s17
      %23 = dma.hbm_to_vmem [thread:$0]  %s0, 128, %s18, [#allocation3], 64, 64, 4
    $region5: #{tpu_custom_call.1} parent=1 // pred_fallthru
      _
    // Predicated region
    $region6: #{tpu_custom_call.1} parent=1 // pred_check
      _
    $region7: #{tpu_custom_call.1} parent=1 // pred_check_branch
      %25 = sbr.rel (0) target = $region9
    $region8: #{tpu_custom_call.1} parent=1 // pred_region
      %s27 = ssub.s32 128, 128
      %28 = vsyncadd [#allocation6], %s27
      %s29 = sshll.u32 [#allocation5], 4
      %s30 = int_to_ptr.vmem [resolvable:$true] %s29
      %35 = dma.hbm_to_vmem [thread:$0]  %s1, 128, %s30, [#allocation6], 64, 64, 4
    $region9: #{tpu_custom_call.1} parent=1 // pred_fallthru
      _
    // Predicated region
    $region10: #{tpu_custom_call.1} parent=1 // pred_check
      _
    $region11: #{tpu_custom_call.1} parent=1 // pred_check_branch
      %37 = sbr.rel (0) target = $region13
    $region12: #{tpu_custom_call.1} parent=1 // pred_region
      %s39 = ssub.s32 1536, 1536
      %40 = vsyncadd [#allocation6], %s39
      %s41 = sshll.u32 [#allocation7], 4
      %s42 = int_to_ptr.vmem [resolvable:$true] %s41
      %47 = dma.hbm_to_vmem [thread:$0]  %s2, 1536, %s42, [#allocation6], 128, 128, 8
    $region13: #{tpu_custom_call.1} parent=1 // pred_fallthru
      _
    // Predicated region
    $region14: #{tpu_custom_call.1} parent=1 // pred_check
      _
    $region15: #{tpu_custom_call.1} parent=1 // pred_check_branch
      %49 = sbr.rel (0) target = $region17
    $region16: #{tpu_custom_call.1} parent=1 // pred_region
      _
    $region17: #{tpu_custom_call.1} parent=1 // pred_fallthru
      _
    // Predicated region
    $region18: #{tpu_custom_call.1} parent=1 // pred_check
      _
    $region19: #{tpu_custom_call.1} parent=1 // pred_check_branch
      %51 = sbr.rel (0) target = $region21
    $region20: #{tpu_custom_call.1} parent=1 // pred_region
      %52 = dma.done [#allocation3], 128
    $region21: #{tpu_custom_call.1} parent=1 // pred_fallthru
      _
    // Predicated region
    $region22: #{tpu_custom_call.1} parent=1 // pred_check
      _
    $region23: #{tpu_custom_call.1} parent=1 // pred_check_branch
      %54 = sbr.rel (0) target = $region25
    $region24: #{tpu_custom_call.1} parent=1 // pred_region
      %55 = dma.done [#allocation6], 128
    $region25: #{tpu_custom_call.1} parent=1 // pred_fallthru
      _
    // Predicated region
    $region26: #{tpu_custom_call.1} parent=1 // pred_check
      _
    $region27: #{tpu_custom_call.1} parent=1 // pred_check_branch
      %57 = sbr.rel (0) target = $region29
    $region28: #{tpu_custom_call.1} parent=1 // pred_region
      %58 = dma.done [#allocation6], 1536
    $region29: #{tpu_custom_call.1} parent=1 // pred_fallthru
      _
    %v60 = vld [vmem:[#allocation2] sm:$0xf]
    %v61 = vld [vmem:[#allocation2 + $0x4] sm:$0xf]
    %v62 = vld [vmem:[#allocation7] sm:$0xff]
    %v63 = vld [vmem:[#allocation7 + $0x8] sm:$0xff]
    %v64 = vld [vmem:[#allocation7 + $0x10] sm:$0xff]
    %v65 = vld [vmem:[#allocation7 + $0x18] sm:$0xff]
    %v66 = vld [vmem:[#allocation7 + $0x20] sm:$0xff]
    %v67 = vld [vmem:[#allocation7 + $0x28] sm:$0xff]
    %v68 = vld [vmem:[#allocation7 + $0x30] sm:$0xff]
    %v69 = vld [vmem:[#allocation7 + $0x38] sm:$0xff]
    %v70 = vld [vmem:[#allocation7 + $0x40] sm:$0xff]
    %v71 = vld [vmem:[#allocation7 + $0x48] sm:$0xff]
    %v72 = vld [vmem:[#allocation7 + $0x50] sm:$0xff]
    %v73 = vld [vmem:[#allocation7 + $0x58] sm:$0xff]
    %v74 = vld [vmem:[%s3] sm:$0x3]
    %v76 = vlaneseq
    %v77 = vshrl.u32 %v76, 7
    %v78 = vsub.s32 0, %v77
    %v79 = vrot.slane %v74, %v78
    %v80 = vlaneseq
    %v81 = vshrl.u32 %v80, 7
    %v82 = vsub.s32 1, %v81
    %v83 = vrot.slane %v74, %v82
    %v88 = vunpack.c.l.b16 %v60
    %v89 = vunpack.c.l.b16 %v61
    %v90 = vpack.c.b16 %v89, %v88
    %v103 = vunpack.c.l.b16 %v62
    %v104 = vunpack.c.h.b16 %v62
    %v105 = vunpack.c.l.b16 %v63
    %v106 = vunpack.c.h.b16 %v63
    %v107 = vunpack.c.l.b16 %v64
    %v108 = vunpack.c.h.b16 %v64
    %v109 = vunpack.c.l.b16 %v65
    %v110 = vunpack.c.h.b16 %v65
    %v111 = vunpack.c.l.b16 %v66
    %v112 = vunpack.c.h.b16 %v66
    %v113 = vunpack.c.l.b16 %v67
    %v114 = vunpack.c.h.b16 %v67
    %v115 = vunpack.c.l.b16 %v68
    %v116 = vunpack.c.h.b16 %v68
    %v117 = vunpack.c.l.b16 %v69
    %v118 = vunpack.c.h.b16 %v69
    %v119 = vunpack.c.l.b16 %v70
    %v120 = vunpack.c.h.b16 %v70
    %v121 = vunpack.c.l.b16 %v71
    %v122 = vunpack.c.h.b16 %v71
    %v123 = vunpack.c.l.b16 %v72
    %v124 = vunpack.c.h.b16 %v72
    %v125 = vunpack.c.l.b16 %v73
    %v126 = vunpack.c.h.b16 %v73
    %v127 = vpack.c.b16 %v105, %v103
    %v128 = vpack.c.b16 %v106, %v104
    %v129 = vpack.c.b16 %v109, %v107
    %v130 = vpack.c.b16 %v110, %v108
    %v131 = vpack.c.b16 %v113, %v111
    %v132 = vpack.c.b16 %v114, %v112
    %v133 = vpack.c.b16 %v117, %v115
    %v134 = vpack.c.b16 %v118, %v116
    %v135 = vpack.c.b16 %v121, %v119
    %v136 = vpack.c.b16 %v122, %v120
    %v137 = vpack.c.b16 %v125, %v123
    %v138 = vpack.c.b16 %v126, %v124
    %vm151 = vcmask 785408
    %v153 = vsel %vm151, %v90, 0
    %155 = vmatprep.subr.bf16.mxu0 %v128
    %156 = vmatpush1.bf16.msra.mxu0 %v127
    %157 = vmatprep.subr.bf16.mxu0 %v130
    %158 = vmatpush1.bf16.msra.mxu0 %v129
    %159 = vmatprep.subr.bf16.mxu0 %v132
    %160 = vmatpush1.bf16.msra.mxu0 %v131
    %161 = vmatprep.subr.bf16.mxu0 %v134
    %162 = vmatpush1.bf16.msra.mxu0 %v133
    %163 = vmatprep.subr.bf16.mxu0 %v136
    %164 = vmatpush1.bf16.msra.mxu0 %v135
    %165 = vmatprep.subr.bf16.mxu0 %v138
    %166 = vmatpush1.bf16.msra.mxu0 %v137
    %167 = vmatprep.subr.bf16.mxu0 0
    %168 = vmatpush1.bf16.msra.mxu0 0
    %169 = vmatprep.subr.bf16.mxu0 0
    %170 = vmatpush1.bf16.msra.mxu0 0
    %171 = vmatprep.subr.bf16.mxu0 0
    %172 = vmatpush1.bf16.msra.mxu0 0
    %173 = vmatprep.subr.bf16.mxu0 0
    %174 = vmatpush1.bf16.msra.mxu0 0
    %175 = vmatprep.subr.bf16.mxu0 0
    %176 = vmatpush1.bf16.msra.mxu0 0
    %177 = vmatprep.subr.bf16.mxu0 0
    %178 = vmatpush1.bf16.msra.mxu0 0
    %179 = vmatprep.subr.bf16.mxu0 0
    %180 = vmatpush1.bf16.msra.mxu0 0
    %181 = vmatprep.subr.bf16.mxu0 0
    %182 = vmatpush1.bf16.msra.mxu0 0
    %183 = vmatprep.subr.bf16.mxu0 0
    %184 = vmatpush1.bf16.msra.mxu0 0
    %185 = vmatprep.subr.bf16.mxu0 0
    %186 = vmatpush1.bf16.msra.mxu0 0
    %187 = vmatprep.mubr.bf16.mxu0 0
    %188 = vmatmul.mubr.bf16.gmra.mrb[0].mxu0 %v153
    %v189 = vpop.f32.mrb[0].mxu0
    %v190 = vadd.f32 %v79, %v189
    %v191 = vpop.f32.mrb[0].mxu0
    %v192 = vadd.f32 %v83, %v191
    %v193 = vpop.f32.mrb[0].mxu0
    %v194 = vadd.f32 %v79, %v193
    %v195 = vpop.f32.mrb[0].mxu0
    %v196 = vadd.f32 %v83, %v195
    %197 = vdwg.mxu0
    %v198 = vsub.f32 0.0, %v190
    %v199 = vsub.f32 0.0, %v194
    %v200 = vmul.f32 %v198, 1.442695
    %v201 = vpow.pop %v200
    %v202 = vmul.f32 %v199, 1.442695
    %v203 = vpow.pop %v202
    %v204 = vadd.f32 %v201, 1.0
    %v205 = vadd.f32 %v203, 1.0
    %v206 = vrcp.pop %v204
    %v207 = vrcp.pop %v205
    %v208 = vsub.f32 0.0, %v192
    %v209 = vsub.f32 0.0, %v196
    %v210 = vmul.f32 %v208, 1.442695
    %v211 = vpow.pop %v210
    %v212 = vmul.f32 %v209, 1.442695
    %v213 = vpow.pop %v212
    %v214 = vadd.f32 %v211, 1.0
    %v215 = vadd.f32 %v213, 1.0
    %v216 = vrcp.pop %v214
    %v217 = vrcp.pop %v215
    %vm218 = vcmp.gt.f32.partialorder %v192, 20.0
    %vm219 = vcmp.gt.f32.partialorder %v196, 20.0
    %v220 = vmin.f32 %v192, 20.0
    %v221 = vmin.f32 %v196, 20.0
    %v222 = vmul.f32 %v220, 1.442695
    %v223 = vpow.pop %v222
    %v224 = vmul.f32 %v221, 1.442695
    %v225 = vpow.pop %v224
    %v226 = vadd.f32 %v223, 1.0
    %v227 = vlog2.pop %v226
    %v228 = vmul.f32 %v227, 0.6931472
    %v229 = vmul.f32 -0.5, %v223
    %v230 = vadd.f32 %v229, 1.0
    %v231 = vmul.f32 %v230, %v223
    %v232 = vand.u32 2147483647, %v223
    %vm233 = vcmp.lt.f32.partialorder %v232, 0.0004427343
    %v234 = vsel %vm233, %v231, %v228
    %v235 = vadd.f32 %v225, 1.0
    %v236 = vlog2.pop %v235
    %v237 = vmul.f32 %v236, 0.6931472
    %v238 = vmul.f32 -0.5, %v225
    %v239 = vadd.f32 %v238, 1.0
    %v240 = vmul.f32 %v239, %v225
    %v241 = vand.u32 2147483647, %v225
    %vm242 = vcmp.lt.f32.partialorder %v241, 0.0004427343
    %v243 = vsel %vm242, %v240, %v237
    %v244 = vsel %vm218, %v192, %v234
    %v245 = vsel %vm219, %v196, %v243
    %248 = vrot.lane.b32.xlu0 %v216, 32
    %v249 = vpop.permute.xlu0 %248
    %250 = vrot.lane.b32.xlu0 %v217, 32
    %v251 = vpop.permute.xlu0 %250
    %v254 = vmul.f32 %v192, %v249
    %v255 = vmul.f32 %v196, %v251
    %v256 = vld [vmem:[#allocation5] sm:$0xf]
    %v257 = vld [vmem:[#allocation5 + $0x4] sm:$0xf]
    %v258 = vunpack.c.l.bf16 %v256
    %v259 = vunpack.c.l.bf16 %v257
    %262 = vrot.lane.b32.xlu0 %v254, 32
    %v263 = vpop.permute.xlu0 %262
    %264 = vrot.lane.b32.xlu0 %v255, 32
    %v265 = vpop.permute.xlu0 %264
    %vm268 = vcmask 523264
    %v269 = vsel %vm268, %v258, %v254
    %v270 = vsel %vm268, %v259, %v255
    %v271 = vsel %vm151, %v269, %v263
    %v272 = vsel %vm151, %v270, %v265
    %v273 = vmul.f32 %v206, %v271
    %v274 = vmul.f32 %v207, %v272
    %277 = vrot.lane.b32.xlu0 %v273, 64
    %v278 = vpop.permute.xlu0 %277
    %279 = vrot.lane.b32.xlu0 %v274, 64
    %v280 = vpop.permute.xlu0 %279
    %v283 = vadd.f32 %v273, %v278
    %v284 = vadd.f32 %v274, %v280
    %287 = vrot.lane.b32.xlu0 %v244, 96
    %v288 = vpop.permute.xlu0 %287
    %289 = vrot.lane.b32.xlu0 %v245, 96
    %v290 = vpop.permute.xlu0 %289
    %293 = vrot.lane.b32.xlu0 %v216, 96
    %v294 = vpop.permute.xlu0 %293
    %295 = vrot.lane.b32.xlu0 %v217, 96
    %v296 = vpop.permute.xlu0 %295
    %v299 = vsel %vm268, %v283, %v288
    %v300 = vsel %vm268, %v284, %v290
    %v301 = vsel %vm151, %v299, %v294
    %v302 = vsel %vm151, %v300, %v296
    %v303 = vpack.c.bf16 %v302, %v301
    %v305 = vunpack.c.l.b16 %v303
    %v306 = vunpack.c.h.b16 %v303
    %v307 = vpack.c.b16 %v305, %v305
    %v308 = vpack.c.b16 %v306, %v306
    %311 = vst [vmem:[#allocation8] sm:$0xf] %v307
    %312 = vst [vmem:[#allocation8 + $0x4] sm:$0xf] %v308
    // Predicated region
    $region30: #{tpu_custom_call.1} parent=1 // pred_check
      _
    $region31: #{tpu_custom_call.1} parent=1 // pred_check_branch
      %314 = sbr.rel (0) target = $region33
    $region32: #{tpu_custom_call.1} parent=1 // pred_region
      %s316 = ssub.s32 128, 128
      %317 = vsyncadd [#allocation4], %s316
      %s318 = sshll.u32 [#allocation8], 4
      %s319 = int_to_ptr.vmem [resolvable:$true] %s318
      %324 = dma.vmem_to_hbm [thread:$0]  %s319, 128, %s4, [#allocation4], 64, 64, 4
    $region33: #{tpu_custom_call.1} parent=1 // pred_fallthru
      _
    // Predicated region
    $region34: #{tpu_custom_call.1} parent=1 // pred_check
      _
    $region35: #{tpu_custom_call.1} parent=1 // pred_check_branch
      %326 = sbr.rel (0) target = $region37
    $region36: #{tpu_custom_call.1} parent=1 // pred_region
      %327 = dma.done [#allocation4], 128
    $region37: #{tpu_custom_call.1} parent=1 // pred_fallthru
      _
    %328 = vsyncpa [#allocation3], 1
    %329 = vsyncpa [#allocation6], 1
    %330 = vsyncpa [#allocation4], 1

</llo_original>
